<compile_context>
chip_gen: v7x
topology: tpu7x:2x2x1
jax: 0.10.0
libtpu: 0.0.40
codegen_flags: <defaults>
</compile_context>

<pallas_src>
import functools

import jax
import jax.numpy as jnp
from jax.experimental import pallas as pl
from jax.experimental.pallas import tpu as pltpu


_SINGLE_PASS_TARGET_BLOCK_BYTES = 4 * 1024 * 1024   # target (bn, C, HW) slab size
_SINGLE_PASS_MAX_SAMPLE_BYTES = 6 * 1024 * 1024     # above this one sample is too big
_SINGLE_PASS_VMEM_LIMIT = 64 * 1024 * 1024          # explicit; don't rely on defaults
_TILED_VMEM_LIMIT = 32 * 1024 * 1024
_SPATIAL_TILE_TARGET_BYTES = 2 * 1024 * 1024


# ---------------------------------------------------------------------------
# Kernels
# ---------------------------------------------------------------------------

def _sf_single_pass_kernel(u_ref, w1t_ref, w2t_ref, o_ref, attn_ref):
    # u_ref/o_ref: (bn, C, HW)   w1t_ref: (C, C//2) f32   w2t_ref: (C//2, C) f32
    # attn_ref: (bn, 1, C)
    hw = u_ref.shape[-1]

    # AdaptiveAvgPool2d(1): f32-accumulated mean over the flattened spatial axis.
    # (No f32 copy of the whole streaming tile is ever materialized.)
    z = jnp.sum(u_ref[...], axis=-1, dtype=jnp.float32) * (1.0 / hw)        # (bn, C)

    # 1x1 convs (no bias) == row-vector matmuls against pre-transposed weights.
    s = jnp.dot(z, w1t_ref[...], preferred_element_type=jnp.float32)        # (bn, C//2)
    e = jnp.dot(s, w2t_ref[...], preferred_element_type=jnp.float32)        # (bn, C)

    # freqAtten (pre-sigmoid), lane-dense: C on the lane axis.
    attn_ref[...] = e[:, None, :].astype(attn_ref.dtype)                    # (bn, 1, C)

    # Gate + scale in the streaming dtype; only the (bn, C) gate is cast.
    g = jax.nn.sigmoid(e).astype(o_ref.dtype)                               # (bn, C)
    o_ref[...] = u_ref[...] * g[:, :, None]                                 # (bn, C, HW)


def _pool_kernel(u_ref, z_ref, acc_ref, *, inv_hw):
    # u_ref: (1, C, tile_hw)  z_ref: (1, 1, C)  acc_ref: (1, C) f32 scratch
    s = pl.program_id(1)

    @pl.when(s == 0)
    def _():
        acc_ref[...] = jnp.zeros_like(acc_ref)

    acc_ref[...] += jnp.sum(u_ref[...], axis=-1, dtype=jnp.float32)         # (1, C)

    @pl.when(s == pl.num_programs(1) - 1)
    def _():
        z_ref[...] = (acc_ref[...] * inv_hw)[:, None, :]                    # (1, 1, C)


def _scale_kernel(u_ref, g_ref, o_ref):
    # u_ref/o_ref: (1, C, tile_hw)   g_ref: (1, C, 1) already in o_ref.dtype
    o_ref[...] = u_ref[...] * g_ref[...]


# ---------------------------------------------------------------------------
# Wrappers
# ---------------------------------------------------------------------------

def _pick_batch_block(n, sample_bytes, target_bytes):
    """Largest divisor of n with bn*sample_bytes <= target_bytes (>= 1)."""
    bn = max(1, min(n, target_bytes // max(1, sample_bytes)))
    while n % bn:
        bn -= 1
    return bn


def _pick_spatial_tile(hw, c, itemsize, target_bytes):
    """Largest tile that is a multiple of 128, divides hw, and keeps one
    (1, C, tile) block under target_bytes. None if no such tile exists."""
    max_tile = max(128, (target_bytes // max(1, c * itemsize)) // 128 * 128)
    start = min(max_tile, hw)
    start -= start % 128
    for cand in range(start, 127, -128):
        if hw % cand == 0:
            return cand
    return None


def _single_pass(u_flat, w1t, w2t, N, C, HW, bn, dtype):
    return pl.pallas_call(
        _sf_single_pass_kernel,
        out_shape=(
            jax.ShapeDtypeStruct((N, C, HW), dtype),
            jax.ShapeDtypeStruct((N, 1, C), dtype),
        ),
        grid_spec=pltpu.PrefetchScalarGridSpec(
            num_scalar_prefetch=0,
            grid=(N // bn,),
            in_specs=[
                pl.BlockSpec((bn, C, HW), lambda b: (b, 0, 0)),
                pl.BlockSpec((C, C // 2), lambda b: (0, 0)),
                pl.BlockSpec((C // 2, C), lambda b: (0, 0)),
            ],
            out_specs=[
                pl.BlockSpec((bn, C, HW), lambda b: (b, 0, 0)),
                pl.BlockSpec((bn, 1, C), lambda b: (b, 0, 0)),
            ],
        ),
        compiler_params=pltpu.CompilerParams(
            dimension_semantics=("parallel",),
            vmem_limit_bytes=_SINGLE_PASS_VMEM_LIMIT,
        ),
        input_output_aliases={0: 0},   # scaled output reuses U's HBM buffer
    )(u_flat, w1t, w2t)


def _two_phase(u_flat, w1t, w2t, N, C, HW, tile_hw, dtype):
    n_tiles = HW // tile_hw

    # Phase 1: spatially tiled global-average pool (channel sums in VMEM scratch).
    pooled = pl.pallas_call(
        functools.partial(_pool_kernel, inv_hw=1.0 / HW),
        out_shape=jax.ShapeDtypeStruct((N, 1, C), jnp.float32),
        grid_spec=pltpu.PrefetchScalarGridSpec(
            num_scalar_prefetch=0,
            grid=(N, n_tiles),
            in_specs=[pl.BlockSpec((1, C, tile_hw), lambda b, s: (b, 0, s))],
            out_specs=pl.BlockSpec((1, 1, C), lambda b, s: (b, 0, 0)),
            scratch_shapes=[pltpu.VMEM((1, C), jnp.float32)],
        ),
        compiler_params=pltpu.CompilerParams(
            dimension_semantics=("parallel", "arbitrary"),
            vmem_limit_bytes=_TILED_VMEM_LIMIT,
        ),
    )(u_flat)

    # Tiny SE matmuls + sigmoid on the pooled (N, C) vectors in plain JAX
    # (keeps the CxC/2 weight slabs out of the streaming kernel for large C).
    z = pooled[:, 0, :]                                                # (N, C) f32
    e = (z @ w1t) @ w2t                                                # (N, C) f32
    attn = e[:, None, :].astype(dtype)                                 # (N, 1, C)
    gate = jax.nn.sigmoid(e).astype(dtype)[:, :, None]                 # (N, C, 1)

    # Phase 2: spatially tiled scale pass (both grid axes parallel).
    out_flat = pl.pallas_call(
        _scale_kernel,
        out_shape=jax.ShapeDtypeStruct((N, C, HW), dtype),
        grid_spec=pltpu.PrefetchScalarGridSpec(
            num_scalar_prefetch=0,
            grid=(N, n_tiles),
            in_specs=[
                pl.BlockSpec((1, C, tile_hw), lambda b, s: (b, 0, s)),
                pl.BlockSpec((1, C, 1), lambda b, s: (b, 0, 0)),
            ],
            out_specs=pl.BlockSpec((1, C, tile_hw), lambda b, s: (b, 0, s)),
        ),
        compiler_params=pltpu.CompilerParams(
            dimension_semantics=("parallel", "parallel"),
            vmem_limit_bytes=_TILED_VMEM_LIMIT,
        ),
        input_output_aliases={0: 0},
    )(u_flat, gate)

    return out_flat, attn


@functools.partial(
    jax.jit, static_argnames=("force_two_phase", "spatial_tile_target_bytes"))
def sf_attention(U, w_squeeze, w_excite, *, force_two_phase=False,
                 spatial_tile_target_bytes=_SPATIAL_TILE_TARGET_BYTES):
    """U: (N, C, H, W).  w_squeeze: (C//2, C, 1, 1).  w_excite: (C, C//2, 1, 1).

    Returns (U_cse (N, C, H, W), freqAtten (N, C, 1)) matching the PyTorch module.
    """
    N, C, H, W = U.shape
    HW = H * W
    itemsize = jnp.dtype(U.dtype).itemsize
    u_flat = U.reshape(N, C, HW)

    # Pre-transpose (and pre-cast to f32) the 1x1-conv weights so the kernel
    # does plain row-vector matmuls with no per-step casts.
    w1t = w_squeeze.reshape(C // 2, C).T.astype(jnp.float32)           # (C, C//2)
    w2t = w_excite.reshape(C, C // 2).T.astype(jnp.float32)            # (C//2, C)

    sample_bytes = C * HW * itemsize
    use_single = (not force_two_phase) and sample_bytes <= _SINGLE_PASS_MAX_SAMPLE_BYTES
    tile_hw = None
    if not use_single:
        tile_hw = _pick_spatial_tile(HW, C, itemsize, spatial_tile_target_bytes)
        if tile_hw is None:
            # TODO(synk): masked partial spatial blocks for non-128-divisible HW.
            use_single = True

    if use_single:
        bn = _pick_batch_block(N, sample_bytes, _SINGLE_PASS_TARGET_BLOCK_BYTES)
        out_flat, attn = _single_pass(u_flat, w1t, w2t, N, C, HW, bn, U.dtype)
    else:
        out_flat, attn = _two_phase(u_flat, w1t, w2t, N, C, HW, tile_hw, U.dtype)

    # attn is lane-dense (N, 1, C); PyTorch freqAtten is (N, C, 1).
    freq_atten = attn.reshape(N, C)[:, :, None]
    return out_flat.reshape(N, C, H, W), freq_atten


# ---------------------------------------------------------------------------
# Reference + test
# ---------------------------------------------------------------------------

def _reference(U, w_squeeze, w_excite):
    N, C, H, W = U.shape
    z = jnp.mean(U, axis=(2, 3))                                       # (N, C)
    s = z @ w_squeeze.reshape(C // 2, C).T                             # (N, C//2)
    e = s @ w_excite.reshape(C, C // 2).T                              # (N, C)
    freq_atten = e[:, :, None]                                         # (N, C, 1)
    out = U * jax.nn.sigmoid(e)[:, :, None, None]
    return out, freq_atten


if __name__ == "__main__":
    key = jax.random.PRNGKey(0)
    k_u, k_w1, k_w2, k_u2, k_u3 = jax.random.split(key, 5)

    # --- small single-pass case (whole batch folds into one grid step) ------
    N, C, H, W = 2, 4, 16, 16
    U = jax.random.normal(k_u, (N, C, H, W), dtype=jnp.float32)
    w_squeeze = jax.random.normal(k_w1, (C // 2, C, 1, 1), dtype=jnp.float32) * 0.3
    w_excite = jax.random.normal(k_w2, (C, C // 2, 1, 1), dtype=jnp.float32) * 0.3

    ref_out, ref_attn = _reference(U, w_squeeze, w_excite)
    out, freq_atten = sf_attention(U, w_squeeze, w_excite)
    jax.block_until_ready((out, freq_atten))
    assert out.shape == (N, C, H, W) and freq_atten.shape == (N, C, 1)
    assert jnp.allclose(out, ref_out, atol=1e-5, rtol=1e-5)
    assert jnp.allclose(freq_atten, ref_attn, atol=1e-5, rtol=1e-5)

    # --- larger batch: exercises batch-blocked single-pass grid (>1 step) ---
    N3, C3, H3, W3 = 6, 8, 16, 16
    U3 = jax.random.normal(k_u3, (N3, C3, H3, W3), dtype=jnp.float32)
    w_sq3 = jax.random.normal(k_w1, (C3 // 2, C3, 1, 1), dtype=jnp.float32) * 0.3
    w_ex3 = jax.random.normal(k_w2, (C3, C3 // 2, 1, 1), dtype=jnp.float32) * 0.3
    ref_out3, ref_attn3 = _reference(U3, w_sq3, w_ex3)
    out3, attn3 = sf_attention(U3, w_sq3, w_ex3)
    jax.block_until_ready((out3, attn3))
    assert jnp.allclose(out3, ref_out3, atol=1e-5, rtol=1e-5)
    assert jnp.allclose(attn3, ref_attn3, atol=1e-5, rtol=1e-5)

    # --- exercise the spatially-tiled two-phase fallback ---------------------
    N2, C2, H2, W2 = 2, 8, 16, 32          # HW = 512 -> 4 spatial tiles of 128
    U2 = jax.random.normal(k_u2, (N2, C2, H2, W2), dtype=jnp.float32)
    w_sq2 = jax.random.normal(k_w1, (C2 // 2, C2, 1, 1), dtype=jnp.float32) * 0.3
    w_ex2 = jax.random.normal(k_w2, (C2, C2 // 2, 1, 1), dtype=jnp.float32) * 0.3

    ref_out2, ref_attn2 = _reference(U2, w_sq2, w_ex2)
    out2, attn2 = sf_attention(U2, w_sq2, w_ex2, force_two_phase=True,
                               spatial_tile_target_bytes=4096)
    jax.block_until_ready((out2, attn2))
    assert out2.shape == (N2, C2, H2, W2) and attn2.shape == (N2, C2, 1)
    assert jnp.allclose(out2, ref_out2, atol=1e-5, rtol=1e-5)
    assert jnp.allclose(attn2, ref_attn2, atol=1e-5, rtol=1e-5)

    print("KERNEL_OK")
</pallas_src>

<mosaic_0001>
module attributes {stable_mosaic.version = 11 : i64} {
  func.func @_sf_single_pass_kernel(%arg0: i32, %arg1: memref<2x4x256xf32, #tpu.memory_space<vmem>>, %arg2: memref<4x2xf32, #tpu.memory_space<vmem>>, %arg3: memref<2x4xf32, #tpu.memory_space<vmem>>, %arg4: memref<2x4x256xf32, #tpu.memory_space<vmem>>, %arg5: memref<2x1x4xf32, #tpu.memory_space<vmem>>) attributes {dimension_semantics = [#tpu.dimension_semantics<parallel>], iteration_bounds = array<i64: 1>, scalar_prefetch = 0 : i64, scratch_operands = 0 : i64, tpu.core_type = #tpu.core_type<tc>, window_params = [{transform_indices = @transform_0, window_bounds = array<i64: 2, 4, 256>}, {pipeline_mode = #tpu.pipeline_mode<synchronous>, transform_indices = @transform_1, window_bounds = array<i64: 4, 2>}, {pipeline_mode = #tpu.pipeline_mode<synchronous>, transform_indices = @transform_2, window_bounds = array<i64: 2, 4>}, {transform_indices = @transform_3, window_bounds = array<i64: 2, 4, 256>}, {transform_indices = @transform_4, window_bounds = array<i64: 2, 1, 4>}]} {
    %c0 = arith.constant 0 : index
    %c0_0 = arith.constant 0 : index
    %c0_1 = arith.constant 0 : index
    %0 = vector.load %arg1[%c0, %c0_0, %c0_1] : memref<2x4x256xf32, #tpu.memory_space<vmem>>, vector<2x4x256xf32>
    %cst = arith.constant dense<0.000000e+00> : vector<2x4xf32>
    %1 = vector.multi_reduction <add>, %0, %cst [2] : vector<2x4x256xf32> to vector<2x4xf32>
    %cst_2 = arith.constant 3.906250e-03 : f32
    %2 = vector.broadcast %cst_2 : f32 to vector<2x4xf32>
    %3 = arith.mulf %1, %2 : vector<2x4xf32>
    %c0_3 = arith.constant 0 : index
    %c0_4 = arith.constant 0 : index
    %4 = vector.load %arg2[%c0_3, %c0_4] : memref<4x2xf32, #tpu.memory_space<vmem>>, vector<4x2xf32>
    %cst_5 = arith.constant dense<0.000000e+00> : vector<2x2xf32>
    %5 = tpu.matmul %3, %4, %cst_5 {dimension_numbers = #tpu.dot_dimension_numbers<[1], [0], [0], [1], [0, 0, 1, 1], [], []>} : vector<2x4xf32>, vector<4x2xf32>, vector<2x2xf32> -> vector<2x2xf32>
    %c0_6 = arith.constant 0 : index
    %c0_7 = arith.constant 0 : index
    %6 = vector.load %arg3[%c0_6, %c0_7] : memref<2x4xf32, #tpu.memory_space<vmem>>, vector<2x4xf32>
    %cst_8 = arith.constant dense<0.000000e+00> : vector<2x4xf32>
    %7 = tpu.matmul %5, %6, %cst_8 {dimension_numbers = #tpu.dot_dimension_numbers<[1], [0], [0], [1], [0, 0, 1, 1], [], []>} : vector<2x2xf32>, vector<2x4xf32>, vector<2x4xf32> -> vector<2x4xf32>
    %8 = vector.shape_cast %7 : vector<2x4xf32> to vector<2x1x4xf32>
    %c0_9 = arith.constant 0 : index
    %c0_10 = arith.constant 0 : index
    %c0_11 = arith.constant 0 : index
    %9 = vector.load %arg5[%c0_9, %c0_10, %c0_11] : memref<2x1x4xf32, #tpu.memory_space<vmem>>, vector<2x1x4xf32>
    tpu.vector_store %arg5[%c0_9, %c0_10, %c0_11], %8 {strides = array<i32>} : memref<2x1x4xf32, #tpu.memory_space<vmem>>, vector<2x1x4xf32>,
    %10 = arith.negf %7 : vector<2x4xf32>
    %11 = math.exp %10 : vector<2x4xf32>
    %cst_12 = arith.constant 1.000000e+00 : f32
    %12 = vector.broadcast %cst_12 : f32 to vector<2x4xf32>
    %13 = arith.addf %12, %11 : vector<2x4xf32>
    %14 = arith.divf %12, %13 : vector<2x4xf32>
    %c0_13 = arith.constant 0 : index
    %c0_14 = arith.constant 0 : index
    %c0_15 = arith.constant 0 : index
    %15 = vector.load %arg1[%c0_13, %c0_14, %c0_15] : memref<2x4x256xf32, #tpu.memory_space<vmem>>, vector<2x4x256xf32>
    %16 = vector.shape_cast %14 : vector<2x4xf32> to vector<2x4x1xf32>
    %17 = vector.broadcast %16 : vector<2x4x1xf32> to vector<2x4x256xf32>
    %18 = arith.mulf %15, %17 : vector<2x4x256xf32>
    %c0_16 = arith.constant 0 : index
    %c0_17 = arith.constant 0 : index
    %c0_18 = arith.constant 0 : index
    %19 = vector.load %arg4[%c0_16, %c0_17, %c0_18] : memref<2x4x256xf32, #tpu.memory_space<vmem>>, vector<2x4x256xf32>
    tpu.vector_store %arg4[%c0_16, %c0_17, %c0_18], %18 {strides = array<i32>} : memref<2x4x256xf32, #tpu.memory_space<vmem>>, vector<2x4x256xf32>,
    return
  }
  func.func @transform_0(%arg0: i32) -> (i32, i32, i32) {
    %c0_i32 = arith.constant 0 : i32
    %c0_i32_0 = arith.constant 0 : i32
    %c0_i32_1 = arith.constant 0 : i32
    return %arg0, %c0_i32, %c0_i32_0 : i32, i32, i32
  }
  func.func @transform_1(%arg0: i32) -> (i32, i32) {
    %c0_i32 = arith.constant 0 : i32
    %c0_i32_0 = arith.constant 0 : i32
    %c0_i32_1 = arith.constant 0 : i32
    return %c0_i32, %c0_i32_0 : i32, i32
  }
  func.func @transform_2(%arg0: i32) -> (i32, i32) {
    %c0_i32 = arith.constant 0 : i32
    %c0_i32_0 = arith.constant 0 : i32
    %c0_i32_1 = arith.constant 0 : i32
    return %c0_i32, %c0_i32_0 : i32, i32
  }
  func.func @transform_3(%arg0: i32) -> (i32, i32, i32) {
    %c0_i32 = arith.constant 0 : i32
    %c0_i32_0 = arith.constant 0 : i32
    %c0_i32_1 = arith.constant 0 : i32
    return %arg0, %c0_i32, %c0_i32_0 : i32, i32, i32
  }
  func.func @transform_4(%arg0: i32) -> (i32, i32, i32) {
    %c0_i32 = arith.constant 0 : i32
    %c0_i32_0 = arith.constant 0 : i32
    %c0_i32_1 = arith.constant 0 : i32
    return %arg0, %c0_i32, %c0_i32_0 : i32, i32, i32
  }
}

</mosaic_0001>

<llo_original>
// kernel: sf_attention.1
$region0: #{sf_attention.1}
  #allocation0 [shape = 'u32[]', space=smem, size = 0x4, offset = 0x4, fixed_abs, tag = 'smem constant byte address 0x4 - core index']
  #allocation1 [shape = 'u32[144,128]{1,0:T(1,128)}', space=vmem, size = 0x12000, scoped, tag = 'internal scratch']
  %s0 = inlined_call_operand.hbm [shape: f32[2,4,256], index: 0, kind: input, shape index: {}, may-alias: {0,3}]
  %s1 = inlined_call_operand.hbm [shape: f32[4,2], index: 1, kind: input, shape index: {}]
  %s2 = inlined_call_operand.hbm [shape: f32[2,4], index: 2, kind: input, shape index: {}]
  %s3 = inlined_call_operand.hbm [shape: f32[2,4,256], index: 3, kind: output, shape index: {0}, may-alias: {0,3}]
  %s4 = inlined_call_operand.hbm [shape: f32[2,1,4], index: 4, kind: output, shape index: {1}]
  %5 = xla_tuple %s3, %s4
  %s6 = sld [smem:[#allocation0]]
  $region42: #{sf_attention.1} parent=0
    _
  %s8 = ssub.s32 1, %s6
  %s9 = scalar_select 0, %s8, %s6
  $region1: #{sf_attention.1} parent=0
    #allocation2 [shape = 'u8[8192]{0}', space=vmem, size = 0x2000, scoped, tag = 'input window, operand 0, single buffered']
    #allocation3 [shape = 's32[1]{0}', space=sflag, size = 0x4, scoped, tag = 'scoped memory for sf_attention.1']
    #allocation4 [shape = 's32[1]{0}', space=sflag, size = 0x4, scoped, tag = 'scoped memory for sf_attention.1']
    #allocation5 [shape = 'u8[2048]{0}', space=vmem, size = 0x800, scoped, tag = 'input window, operand 1, single buffered']
    #allocation6 [shape = 's32[1]{0}', space=sflag, size = 0x4, scoped, tag = 'scoped memory for sf_attention.1']
    #allocation7 [shape = 'u8[1024]{0}', space=vmem, size = 0x400, scoped, tag = 'input window, operand 2, single buffered']
    #allocation8 [shape = 'u8[8192]{0}', space=vmem, size = 0x2000, scoped, tag = 'output window, operand 0, single buffered']
    #allocation9 [shape = 'u8[1024]{0}', space=vmem, size = 0x400, scoped, tag = 'output window, operand 1, single buffered']
    #allocation10 [shape = 's32[1]{0}', space=sflag, size = 0x4, scoped, tag = 'scoped memory for sf_attention.1']
    %10 = vsyncpa [#allocation3], 0
    %11 = vsyncpa [#allocation6], 0
    %12 = vsyncpa [#allocation4], 0
    %13 = vsyncpa [#allocation10], 0
    // Predicated region
    $region2: #{sf_attention.1} parent=1 // pred_check
      _
    $region3: #{sf_attention.1} parent=1 // pred_check_branch
      %15 = sbr.rel (0) target = $region5
    $region4: #{sf_attention.1} parent=1 // pred_region
      %s17 = ssub.s32 256, 256
      %18 = vsyncadd [#allocation3], %s17
      %s19 = sshll.u32 [#allocation2], 4
      %s20 = int_to_ptr.vmem [resolvable:$true] %s19
      %25 = dma.hbm_to_vmem [thread:$0]  %s0, 256, %s20, [#allocation3], 128, 128, 8
    $region5: #{sf_attention.1} parent=1 // pred_fallthru
      _
    // Predicated region
    $region6: #{sf_attention.1} parent=1 // pred_check
      _
    $region7: #{sf_attention.1} parent=1 // pred_check_branch
      %27 = sbr.rel (0) target = $region9
    $region8: #{sf_attention.1} parent=1 // pred_region
      %s29 = ssub.s32 64, 64
      %30 = vsyncadd [#allocation6], %s29
      %s32 = sshll.u32 [#allocation5], 4
      %s33 = int_to_ptr.vmem [resolvable:$true] %s32
      %35 = dma.hbm_to_vmem [thread:$0]  %s1, 64, %s33, [#allocation6]
    $region9: #{sf_attention.1} parent=1 // pred_fallthru
      _
    // Predicated region
    $region10: #{sf_attention.1} parent=1 // pred_check
      _
    $region11: #{sf_attention.1} parent=1 // pred_check_branch
      %37 = sbr.rel (0) target = $region13
    $region12: #{sf_attention.1} parent=1 // pred_region
      %s39 = ssub.s32 32, 32
      %40 = vsyncadd [#allocation6], %s39
      %s42 = sshll.u32 [#allocation7], 4
      %s43 = int_to_ptr.vmem [resolvable:$true] %s42
      %45 = dma.hbm_to_vmem [thread:$0]  %s2, 32, %s43, [#allocation6]
    $region13: #{sf_attention.1} parent=1 // pred_fallthru
      _
    // Predicated region
    $region14: #{sf_attention.1} parent=1 // pred_check
      _
    $region15: #{sf_attention.1} parent=1 // pred_check_branch
      %47 = sbr.rel (0) target = $region17
    $region16: #{sf_attention.1} parent=1 // pred_region
      %48 = dma.done [#allocation3], 256
    $region17: #{sf_attention.1} parent=1 // pred_fallthru
      _
    // Predicated region
    $region18: #{sf_attention.1} parent=1 // pred_check
      _
    $region19: #{sf_attention.1} parent=1 // pred_check_branch
      %50 = sbr.rel (0) target = $region21
    $region20: #{sf_attention.1} parent=1 // pred_region
      %51 = dma.done [#allocation6], 64
    $region21: #{sf_attention.1} parent=1 // pred_fallthru
      _
    // Predicated region
    $region22: #{sf_attention.1} parent=1 // pred_check
      _
    $region23: #{sf_attention.1} parent=1 // pred_check_branch
      %53 = sbr.rel (0) target = $region25
    $region24: #{sf_attention.1} parent=1 // pred_region
      %54 = dma.done [#allocation6], 32
    $region25: #{sf_attention.1} parent=1 // pred_fallthru
      _
    %v55 = vld [vmem:[#allocation2] sm:$0xff]
    %v56 = vld [vmem:[#allocation2 + $0x8] sm:$0xff]
    %v59 = vcombine.high %v55, %v55
    %v60 = vcombine.high %v56, %v56
    %vm63 = vcmask 1043456
    %v64 = vsel %vm63, %v55, 0.0
    %v65 = vsel %vm63, %v59, 0.0
    %v66 = vadd.f32 %v64, %v65
    %67 = vadd.xlane.f32.xlu0 %v66
    %v68 = vpop.xlane.xlu0 %67
    %v69 = vsel %vm63, %v56, 0.0
    %v70 = vsel %vm63, %v60, 0.0
    %v71 = vadd.f32 %v69, %v70
    %72 = vadd.xlane.f32.xlu0 %v71
    %v73 = vpop.xlane.xlu0 %72
    %v74 = vmul.f32 %v68, 0.00390625
    %v75 = vmul.f32 %v73, 0.00390625
    %v76 = vld [vmem:[#allocation5] sm:$0xf]
    %v79 = vlaneseq
    %v80 = vand.u32 %v79, 127
    %v81 = vlaneseq
    %v82 = vshrl.u32 %v81, 7
    %v83 = vsub.s32 %v80, %v82
    %v84 = vrot.slane %v74, %v83
    %v85 = vlaneseq
    %v86 = vshrl.u32 %v85, 7
    %v87 = vsub.s32 %v80, %v86
    %v88 = vrot.slane %v75, %v87
    %vm89 = vcmask 1041409
    %v90 = vsel %vm89, %v88, %v84
    %vm91 = vcmask 31744
    %v92 = vsel %vm91, %v90, 0
    %v95 = vsel %vm63, %v76, 0
    %97 = vmatprep.subr.mxu0 0.0
    %98 = vmatpush1.msra.mxu0 %v95
    %99 = vmatprep.subr.mxu0 0.0
    %100 = vmatpush1.msra.mxu0 0.0
    %101 = vmatprep.subr.mxu0 0.0
    %102 = vmatpush1.msra.mxu0 0.0
    %103 = vmatprep.subr.mxu0 0.0
    %104 = vmatpush1.msra.mxu0 0.0
    %105 = vmatprep.subr.mxu0 0.0
    %106 = vmatpush1.msra.mxu0 0.0
    %107 = vmatprep.subr.mxu0 0.0
    %108 = vmatpush1.msra.mxu0 0.0
    %109 = vmatprep.subr.mxu0 0.0
    %110 = vmatpush1.msra.mxu0 0.0
    %111 = vmatprep.subr.mxu0 0.0
    %112 = vmatpush1.msra.mxu0 0.0
    %113 = vmatprep.subr.mxu0 0.0
    %114 = vmatpush1.msra.mxu0 0.0
    %115 = vmatprep.subr.mxu0 0.0
    %116 = vmatpush1.msra.mxu0 0.0
    %117 = vmatprep.subr.mxu0 0.0
    %118 = vmatpush1.msra.mxu0 0.0
    %119 = vmatprep.subr.mxu0 0.0
    %120 = vmatpush1.msra.mxu0 0.0
    %121 = vmatprep.subr.mxu0 0.0
    %122 = vmatpush1.msra.mxu0 0.0
    %123 = vmatprep.subr.mxu0 0.0
    %124 = vmatpush1.msra.mxu0 0.0
    %125 = vmatprep.subr.mxu0 0.0
    %126 = vmatpush1.msra.mxu0 0.0
    %127 = vmatprep.subr.mxu0 0.0
    %128 = vmatpush1.msra.mxu0 0.0
    %129 = vmatprep.subr.mxu0 0.0
    %130 = vmatpush1.msra.mxu0 0.0
    %131 = vmatprep.subr.mxu0 0.0
    %132 = vmatpush1.msra.mxu0 0.0
    %133 = vmatprep.subr.mxu0 0.0
    %134 = vmatpush1.msra.mxu0 0.0
    %135 = vmatprep.subr.mxu0 0.0
    %136 = vmatpush1.msra.mxu0 0.0
    %137 = vmatprep.subr.mxu0 0.0
    %138 = vmatpush1.msra.mxu0 0.0
    %139 = vmatprep.subr.mxu0 0.0
    %140 = vmatpush1.msra.mxu0 0.0
    %141 = vmatprep.subr.mxu0 0.0
    %142 = vmatpush1.msra.mxu0 0.0
    %143 = vmatprep.subr.mxu0 0.0
    %144 = vmatpush1.msra.mxu0 0.0
    %145 = vmatprep.subr.mxu0 0.0
    %146 = vmatpush1.msra.mxu0 0.0
    %147 = vmatprep.subr.mxu0 0.0
    %148 = vmatpush1.msra.mxu0 0.0
    %149 = vmatprep.subr.mxu0 0.0
    %150 = vmatpush1.msra.mxu0 0.0
    %151 = vmatprep.subr.mxu0 0.0
    %152 = vmatpush1.msra.mxu0 0.0
    %153 = vmatprep.subr.mxu0 0.0
    %154 = vmatpush1.msra.mxu0 0.0
    %155 = vmatprep.subr.mxu0 0.0
    %156 = vmatpush1.msra.mxu0 0.0
    %157 = vmatprep.subr.mxu0 0.0
    %158 = vmatpush1.msra.mxu0 0.0
    %159 = vmatprep.subr.mxu0 0.0
    %160 = vmatpush1.msra.mxu0 0.0
    %161 = vmatprep.mubr.f32.mxu0 0.0
    %162 = vmatmul.mubr.f32.gmra.mrb[0].mxu0 %v92
    %v163 = vpop.f32.mrb[0].mxu0
    %v164 = vadd.f32 0.0, %v163
    %v165 = vpop.f32.mrb[0].mxu0
    %166 = vdwg.mxu0
    %v167 = vld [vmem:[#allocation7] sm:$0x3]
    %vm168 = vcmask 15360
    %v170 = vsel %vm168, %v164, 0
    %vm172 = vcmask 1041408
    %v174 = vsel %vm172, %v167, 0
    %176 = vmatprep.subr.mxu0 0.0
    %177 = vmatpush1.msra.mxu0 %v174
    %178 = vmatprep.subr.mxu0 0.0
    %179 = vmatpush1.msra.mxu0 0.0
    %180 = vmatprep.subr.mxu0 0.0
    %181 = vmatpush1.msra.mxu0 0.0
    %182 = vmatprep.subr.mxu0 0.0
    %183 = vmatpush1.msra.mxu0 0.0
    %184 = vmatprep.subr.mxu0 0.0
    %185 = vmatpush1.msra.mxu0 0.0
    %186 = vmatprep.subr.mxu0 0.0
    %187 = vmatpush1.msra.mxu0 0.0
    %188 = vmatprep.subr.mxu0 0.0
    %189 = vmatpush1.msra.mxu0 0.0
    %190 = vmatprep.subr.mxu0 0.0
    %191 = vmatpush1.msra.mxu0 0.0
    %192 = vmatprep.subr.mxu0 0.0
    %193 = vmatpush1.msra.mxu0 0.0
    %194 = vmatprep.subr.mxu0 0.0
    %195 = vmatpush1.msra.mxu0 0.0
    %196 = vmatprep.subr.mxu0 0.0
    %197 = vmatpush1.msra.mxu0 0.0
    %198 = vmatprep.subr.mxu0 0.0
    %199 = vmatpush1.msra.mxu0 0.0
    %200 = vmatprep.subr.mxu0 0.0
    %201 = vmatpush1.msra.mxu0 0.0
    %202 = vmatprep.subr.mxu0 0.0
    %203 = vmatpush1.msra.mxu0 0.0
    %204 = vmatprep.subr.mxu0 0.0
    %205 = vmatpush1.msra.mxu0 0.0
    %206 = vmatprep.subr.mxu0 0.0
    %207 = vmatpush1.msra.mxu0 0.0
    %208 = vmatprep.subr.mxu0 0.0
    %209 = vmatpush1.msra.mxu0 0.0
    %210 = vmatprep.subr.mxu0 0.0
    %211 = vmatpush1.msra.mxu0 0.0
    %212 = vmatprep.subr.mxu0 0.0
    %213 = vmatpush1.msra.mxu0 0.0
    %214 = vmatprep.subr.mxu0 0.0
    %215 = vmatpush1.msra.mxu0 0.0
    %216 = vmatprep.subr.mxu0 0.0
    %217 = vmatpush1.msra.mxu0 0.0
    %218 = vmatprep.subr.mxu0 0.0
    %219 = vmatpush1.msra.mxu0 0.0
    %220 = vmatprep.subr.mxu0 0.0
    %221 = vmatpush1.msra.mxu0 0.0
    %222 = vmatprep.subr.mxu0 0.0
    %223 = vmatpush1.msra.mxu0 0.0
    %224 = vmatprep.subr.mxu0 0.0
    %225 = vmatpush1.msra.mxu0 0.0
    %226 = vmatprep.subr.mxu0 0.0
    %227 = vmatpush1.msra.mxu0 0.0
    %228 = vmatprep.subr.mxu0 0.0
    %229 = vmatpush1.msra.mxu0 0.0
    %230 = vmatprep.subr.mxu0 0.0
    %231 = vmatpush1.msra.mxu0 0.0
    %232 = vmatprep.subr.mxu0 0.0
    %233 = vmatpush1.msra.mxu0 0.0
    %234 = vmatprep.subr.mxu0 0.0
    %235 = vmatpush1.msra.mxu0 0.0
    %236 = vmatprep.subr.mxu0 0.0
    %237 = vmatpush1.msra.mxu0 0.0
    %238 = vmatprep.subr.mxu0 0.0
    %239 = vmatpush1.msra.mxu0 0.0
    %240 = vmatprep.mubr.f32.mxu0 0.0
    %241 = vmatmul.mubr.f32.gmra.mrb[0].mxu0 %v170
    %v242 = vpop.f32.mrb[0].mxu0
    %v243 = vadd.f32 0.0, %v242
    %v244 = vpop.f32.mrb[0].mxu0
    %245 = vdwg.mxu0
    %v248 = vunpack.c.l.s4 1966171168
    %v249 = vunpack.c.0.s8 %v248
    %v250 = vlaneseq
    %v251 = vshrl.u32 %v250, 7
    %v252 = vsub.s32 %v249, %v251
    %v253 = vrot.slane %v243, %v252
    %v254 = vcombine.high %v253, %v253
    %v256 = vunpack.c.l.s4 1966171168
    %v257 = vunpack.c.0.s8 %v256
    %v258 = vlaneseq
    %v259 = vshrl.u32 %v258, 7
    %v260 = vsub.s32 %v257, %v259
    %v261 = vrot.slane %v253, %v260
    %v263 = vunpack.c.l.s4 1966171168
    %v264 = vunpack.c.0.s8 %v263
    %v265 = vlaneseq
    %v266 = vshrl.u32 %v265, 7
    %v267 = vsub.s32 %v264, %v266
    %v268 = vrot.slane %v254, %v267
    %vm271 = vcmask 24576
    %272 = vst.msk [vmem:[#allocation9] sm:$0x1] %vm271, %v261
    %273 = vst.msk [vmem:[#allocation9 + $0x1] sm:$0x1] %vm271, %v268
    %v274 = vxor.u32 %v243, 2147483648
    %v275 = vmul.f32 %v274, 1.442695
    %v276 = vpow.pop %v275
    %v277 = vadd.f32 %v276, 1.0
    %v278 = vrcp.pop %v277
    %v279 = vmul.f32 1.0, %v278
    %v280 = vld [vmem:[#allocation2] sm:$0xff]
    %v281 = vld [vmem:[#allocation2 + $0x8] sm:$0xff]
    %v282 = vlaneseq
    %v283 = vshrl.u32 %v282, 7
    %v284 = vsub.s32 0, %v283
    %v285 = vrot.slane %v279, %v284
    %287 = vbcast.lane.b32.xlu0 %v285, 256
    %v288 = vpop.permute.xlu0 %287
    %v289 = vlaneseq
    %v290 = vshrl.u32 %v289, 7
    %v291 = vsub.s32 1, %v290
    %v292 = vrot.slane %v279, %v291
    %294 = vbcast.lane.b32.xlu0 %v292, 256
    %v295 = vpop.permute.xlu0 %294
    %v299 = vunpack.c.l.s4 839922192
    %v300 = vunpack.c.0.s8 %v299
    %v301 = vlaneseq
    %v302 = vshrl.u32 %v301, 7
    %v303 = vsub.s32 %v300, %v302
    %v304 = vrot.slane %v288, %v303
    %v306 = vunpack.c.l.s4 839922192
    %v307 = vunpack.c.0.s8 %v306
    %v308 = vlaneseq
    %v309 = vshrl.u32 %v308, 7
    %v310 = vsub.s32 %v307, %v309
    %v311 = vrot.slane %v295, %v310
    %v314 = vmul.f32 %v280, %v304
    %v315 = vmul.f32 %v281, %v311
    %316 = vst [vmem:[#allocation8] sm:$0xff] %v314
    %317 = vst [vmem:[#allocation8 + $0x8] sm:$0xff] %v315
    // Predicated region
    $region26: #{sf_attention.1} parent=1 // pred_check
      _
    $region27: #{sf_attention.1} parent=1 // pred_check_branch
      %319 = sbr.rel (0) target = $region29
    $region28: #{sf_attention.1} parent=1 // pred_region
      %s321 = ssub.s32 256, 256
      %322 = vsyncadd [#allocation4], %s321
      %s323 = sshll.u32 [#allocation8], 4
      %s324 = int_to_ptr.vmem [resolvable:$true] %s323
      %329 = dma.vmem_to_hbm [thread:$0]  %s324, 256, %s3, [#allocation4], 128, 128, 8
    $region29: #{sf_attention.1} parent=1 // pred_fallthru
      _
    // Predicated region
    $region30: #{sf_attention.1} parent=1 // pred_check
      _
    $region31: #{sf_attention.1} parent=1 // pred_check_branch
      %331 = sbr.rel (0) target = $region33
    $region32: #{sf_attention.1} parent=1 // pred_region
      %s333 = ssub.s32 32, 32
      %334 = vsyncadd [#allocation10], %s333
      %s335 = sshll.u32 [#allocation9], 4
      %s336 = int_to_ptr.vmem [resolvable:$true] %s335
      %341 = dma.vmem_to_hbm [thread:$0]  %s336, 32, %s4, [#allocation10], 16, 16, 1
    $region33: #{sf_attention.1} parent=1 // pred_fallthru
      _
    // Predicated region
    $region34: #{sf_attention.1} parent=1 // pred_check
      _
    $region35: #{sf_attention.1} parent=1 // pred_check_branch
      %343 = sbr.rel (0) target = $region37
    $region36: #{sf_attention.1} parent=1 // pred_region
      %344 = dma.done [#allocation4], 256
    $region37: #{sf_attention.1} parent=1 // pred_fallthru
      _
    // Predicated region
    $region38: #{sf_attention.1} parent=1 // pred_check
      _
    $region39: #{sf_attention.1} parent=1 // pred_check_branch
      %346 = sbr.rel (0) target = $region41
    $region40: #{sf_attention.1} parent=1 // pred_region
      %347 = dma.done [#allocation10], 32
    $region41: #{sf_attention.1} parent=1 // pred_fallthru
      _
    %348 = vsyncpa [#allocation3], 1
    %349 = vsyncpa [#allocation6], 1
    %350 = vsyncpa [#allocation4], 1
    %351 = vsyncpa [#allocation10], 1

</llo_original>
